<compile_context>
chip_gen: v7x
topology: tpu7x:2x2x1
jax: 0.10.0
libtpu: 0.0.40
codegen_flags: <defaults>
</compile_context>

<pallas_src>
import functools
import math

import jax
import jax.numpy as jnp
from jax.experimental import pallas as pl
from jax.experimental.pallas import tpu as pltpu


def _moe_gate_kernel(x_ref, w_ref, idx_ref, tw_ref, *stat_refs,
                     m_total, need_stats):
    """One grid step handles a (tm, H) tile of tokens.

    x_ref   : (tm, H)   activations
    w_ref   : (E, H)    router weight (PyTorch [out, in] layout), VMEM-resident
    idx_ref : (K, tm)   int32 top-k expert ids (lane-dense, transposed)
    tw_ref  : (K, tm)   top-k routing weights (activation dtype, transposed)
    stat_refs (training only):
      pi_ref : (1, E, 1)  sum over valid tokens of softmax scores
      ce_ref : (1, E, 1)  count of top-k hits per expert over valid tokens
    """
    tm = x_ref.shape[0]
    E = w_ref.shape[0]
    K = idx_ref.shape[0]

    x = x_ref[...]
    w = w_ref[...]

    # logits^T: (E, tm), f32 accumulation on the MXU (contract both on H).
    lt = jax.lax.dot_general(
        w, x, (((1,), (1,)), ((), ())), preferred_element_type=jnp.float32)

    # Softmax pieces; expert axis = sublane axis 0, token axis = lane axis 1.
    m = jnp.max(lt, axis=0, keepdims=True)            # (1, tm)
    e = jnp.exp(lt - m)                                # (E, tm)
    denom = jnp.sum(e, axis=0, keepdims=True)          # (1, tm)
    inv = pl.reciprocal(denom, approx=True)            # (1, tm)  (EUP)

    row_ids = jax.lax.broadcasted_iota(jnp.int32, (E, tm), 0)

    # Iterative top-k on raw logits (softmax is monotone): argmax -> knock out
    # winner -> repeat.  K is tiny & static so this unrolls; ties resolve to
    # the lowest index.  k = 0 reuses the softmax row-max (exp(0) == 1).
    work = lt
    idx_rows = []
    for k in range(K):
        vmax = m if k == 0 else jnp.max(work, axis=0, keepdims=True)   # (1, tm)
        hit = work == vmax
        idx_k = jnp.min(jnp.where(hit, row_ids, E), axis=0, keepdims=True)
        idx_rows.append(idx_k)
        val_k = inv if k == 0 else jnp.exp(vmax - m) * inv
        idx_ref[pl.ds(k, 1), :] = idx_k
        tw_ref[pl.ds(k, 1), :] = val_k.astype(tw_ref.dtype)
        if k + 1 < K:
            work = jnp.where(row_ids == idx_k, -jnp.inf, work)

    if need_stats:
        pi_ref, ce_ref = stat_refs
        # Mask ragged-tail tokens of the last block out of the reductions.
        lane_ids = jax.lax.broadcasted_iota(jnp.int32, (1, tm), 1)
        valid = (pl.program_id(0) * tm + lane_ids) < m_total           # (1, tm)
        scores = jnp.where(valid, e * inv, 0.0)                        # (E, tm)
        pi_ref[0] = jnp.sum(scores, axis=1, keepdims=True)             # (E, 1)
        sel = jnp.zeros((E, tm), jnp.float32)
        for idx_k in idx_rows:
            sel = sel + jnp.where(
                jnp.logical_and(row_ids == idx_k, valid), 1.0, 0.0)
        ce_ref[0] = jnp.sum(sel, axis=1, keepdims=True)                # (E, 1)


def _round_up(x, m):
    return (x + m - 1) // m * m


def _gate_vmem_footprint(tm, H, E, K, x_bytes):
    fp = 2 * tm * H * x_bytes          # activation tile, double-buffered
    fp += 2 * E * H * x_bytes          # router weight (default double-buffered)
    fp += 2 * K * tm * (4 + x_bytes)   # top-k idx / weight output blocks
    fp += 4 * E * 4                    # aux-loss partial-sum blocks
    fp += 6 * E * tm * 4               # in-kernel f32 temporaries
    return fp


def _pick_tm(M, H, E, K, x_bytes):
    """Token-tile size: lane-aligned (x128), >=2 grid steps when possible,
    VMEM footprint bounded so it fits comfortably on v7x (64 MiB/TC)."""
    if M <= 128:
        return M                        # single full block (full-dim BlockSpec)
    tm_max = 1024 if x_bytes <= 2 else 512
    tm = max(128, min(tm_max, _round_up(-(-M // 2), 128)))
    budget = 36 * 1024 * 1024
    while tm > 128 and _gate_vmem_footprint(tm, H, E, K, x_bytes) > budget:
        tm -= 128
    return tm


@functools.partial(
    jax.jit, static_argnames=("top_k", "alpha", "norm_topk_prob", "training"))
def tc_moe_gate(hidden_states, weight, *, top_k=2, alpha=0.01,
                norm_topk_prob=False, training=False):
    """Pallas TC_MoEGate forward.

    hidden_states : (B, S, H)
    weight        : (E, H)  (PyTorch nn.Linear-style [out, in] layout)
    Returns (topk_idx (B*S, K) int32, topk_weight (B*S, K) act-dtype,
             aux_loss | None)
    """
    B, S, H = hidden_states.shape
    E, Hw = weight.shape
    assert H == Hw, "weight hidden dim mismatch"
    assert top_k <= E
    M = B * S

    x2d = hidden_states.reshape(M, H)
    # Match activation dtype (halves resident weight VMEM/DMA for bf16 acts);
    # the matmul still accumulates in f32 in-kernel.
    w = weight.astype(hidden_states.dtype)

    x_bytes = jnp.dtype(hidden_states.dtype).itemsize
    tm = _pick_tm(M, H, E, top_k, x_bytes)
    grid_len = (M + tm - 1) // tm
    need_stats = bool(training) and alpha > 0.0

    out_shapes = [jax.ShapeDtypeStruct((top_k, M), jnp.int32),
                  jax.ShapeDtypeStruct((top_k, M), hidden_states.dtype)]
    out_specs = [pl.BlockSpec((top_k, tm), lambda i: (0, i)),
                 pl.BlockSpec((top_k, tm), lambda i: (0, i))]
    if need_stats:
        out_shapes += [jax.ShapeDtypeStruct((grid_len, E, 1), jnp.float32),
                       jax.ShapeDtypeStruct((grid_len, E, 1), jnp.float32)]
        out_specs += [pl.BlockSpec((1, E, 1), lambda i: (i, 0, 0)),
                      pl.BlockSpec((1, E, 1), lambda i: (i, 0, 0))]

    vmem_limit = int(min(
        max(_gate_vmem_footprint(tm, H, E, top_k, x_bytes) + (12 << 20),
            32 << 20),
        56 << 20))

    kernel = functools.partial(
        _moe_gate_kernel, m_total=M, need_stats=need_stats)

    outs = pl.pallas_call(
        kernel,
        out_shape=tuple(out_shapes),
        grid=(grid_len,),
        in_specs=[
            pl.BlockSpec((tm, H), lambda i: (i, 0)),   # token tile (ragged last)
            pl.BlockSpec((E, H), lambda i: (0, 0)),    # router weight, resident
        ],
        out_specs=tuple(out_specs),
        compiler_params=pltpu.CompilerParams(
            dimension_semantics=("parallel",),
            vmem_limit_bytes=vmem_limit,
        ),
    )(x2d, w)

    idx_t, tw_t = outs[0], outs[1]
    topk_idx = idx_t.T            # (M, K) — tiny K*M transpose in XLA
    topk_w = tw_t.T               # (M, K)

    if top_k > 1 and norm_topk_prob:   # module default: False
        topk_w = topk_w / (jnp.sum(topk_w, axis=-1, keepdims=True) + 1e-20)

    aux_loss = None
    if need_stats:
        # seq_aux=False branch; O(E) finish of the in-kernel partial sums.
        # TODO(synk): seq_aux=True branch not implemented (module fixes False).
        pi_parts, ce_parts = outs[2], outs[3]
        Pi = jnp.sum(pi_parts[:, :, 0], axis=0) / M
        ce = jnp.sum(ce_parts[:, :, 0], axis=0) / (M * top_k)
        aux_loss = jnp.sum(Pi * ce * E) * alpha

    return topk_idx, topk_w, aux_loss


def tc_moe_gate_ref(hidden_states, weight, *, top_k=2, alpha=0.01,
                    norm_topk_prob=False, training=False):
    """Pure-JAX reference matching the PyTorch forward."""
    B, S, H = hidden_states.shape
    E = weight.shape[0]
    x = hidden_states.reshape(-1, H).astype(jnp.float32)
    logits = x @ weight.astype(jnp.float32).T
    scores = jax.nn.softmax(logits, axis=-1)
    topk_w, topk_idx = jax.lax.top_k(scores, top_k)
    if top_k > 1 and norm_topk_prob:
        topk_w = topk_w / (jnp.sum(topk_w, axis=-1, keepdims=True) + 1e-20)
    aux = None
    if training and alpha > 0.0:
        ce = jnp.mean(
            jax.nn.one_hot(topk_idx.reshape(-1), E, dtype=jnp.float32), axis=0)
        Pi = jnp.mean(scores, axis=0)
        aux = jnp.sum(Pi * ce * E) * alpha
    return topk_idx, topk_w.astype(hidden_states.dtype), aux


if __name__ == "__main__":
    def run_case(key, batch, seq, embed_dim, num_experts, top_k, training):
        kx, kw = jax.random.split(key)
        x = jax.random.normal(kx, (batch, seq, embed_dim), dtype=jnp.float32)
        # kaiming_uniform_(a=sqrt(5)) ~ U(-1/sqrt(fan_in), 1/sqrt(fan_in))
        bound = 1.0 / math.sqrt(embed_dim)
        w = jax.random.uniform(kw, (num_experts, embed_dim), jnp.float32,
                               minval=-bound, maxval=bound)

        out_idx, out_w, out_aux = tc_moe_gate(
            x, w, top_k=top_k, alpha=0.01, training=training)
        jax.block_until_ready((out_idx, out_w))
        if out_aux is not None:
            jax.block_until_ready(out_aux)

        ref_idx, ref_w, ref_aux = tc_moe_gate_ref(
            x, w, top_k=top_k, alpha=0.01, training=training)

        M = batch * seq
        assert out_idx.shape == (M, top_k)
        assert out_w.shape == (M, top_k)
        assert out_w.dtype == x.dtype
        assert out_idx.dtype == jnp.int32
        assert bool(jnp.all(out_idx >= 0)) and bool(jnp.all(out_idx < num_experts))
        if top_k == 2:
            assert bool(jnp.all(out_idx[:, 0] != out_idx[:, 1]))

        # Robust index check: the kernel-chosen experts must carry the
        # reference top-k probability mass (tolerant of near-tie reorderings).
        scores_ref = jax.nn.softmax(
            (x.reshape(M, embed_dim) @ w.T).astype(jnp.float32), axis=-1)
        gathered = jnp.take_along_axis(scores_ref, out_idx, axis=-1)
        assert jnp.allclose(jnp.sort(gathered, axis=-1),
                            jnp.sort(ref_w.astype(jnp.float32), axis=-1),
                            atol=1e-3, rtol=1e-3), "topk selection mismatch"
        assert jnp.allclose(out_w.astype(jnp.float32),
                            ref_w.astype(jnp.float32),
                            atol=5e-3, rtol=5e-3), "topk_weight mismatch"
        if training:
            assert out_aux is not None
            assert jnp.allclose(out_aux, ref_aux, atol=1e-4, rtol=5e-3), \
                "aux_loss mismatch"
        else:
            assert out_aux is None

    key = jax.random.PRNGKey(0)
    k1, k2, k3 = jax.random.split(key, 3)

    # Small single-block case (grid = 1, full-dim blocks).
    run_case(k1, batch=2, seq=8, embed_dim=128, num_experts=16, top_k=2,
             training=True)
    # Multi-tile ragged case (M=400 -> tm=256, grid=2, masked tail lanes).
    run_case(k2, batch=4, seq=100, embed_dim=256, num_experts=32, top_k=2,
             training=True)
    # Eval path (aux-loss outputs dropped entirely).
    run_case(k3, batch=2, seq=8, embed_dim=128, num_experts=16, top_k=2,
             training=False)

    print("KERNEL_OK")
</pallas_src>

<mosaic_0001>
module attributes {stable_mosaic.version = 11 : i64} {
  func.func @_moe_gate_kernel(%arg0: i32, %arg1: memref<16x128xf32, #tpu.memory_space<vmem>>, %arg2: memref<16x128xf32, #tpu.memory_space<vmem>>, %arg3: memref<2x16xi32, #tpu.memory_space<vmem>>, %arg4: memref<2x16xf32, #tpu.memory_space<vmem>>, %arg5: memref<1x16x1xf32, #tpu.memory_space<vmem>>, %arg6: memref<1x16x1xf32, #tpu.memory_space<vmem>>) attributes {dimension_semantics = [#tpu.dimension_semantics<parallel>], iteration_bounds = array<i64: 1>, scalar_prefetch = 0 : i64, scratch_operands = 0 : i64, tpu.core_type = #tpu.core_type<tc>, window_params = [{transform_indices = @transform_0, window_bounds = array<i64: 16, 128>}, {pipeline_mode = #tpu.pipeline_mode<synchronous>, transform_indices = @transform_1, window_bounds = array<i64: 16, 128>}, {transform_indices = @transform_2, window_bounds = array<i64: 2, 16>}, {transform_indices = @transform_3, window_bounds = array<i64: 2, 16>}, {transform_indices = @transform_4, window_bounds = array<i64: 1, 16, 1>}, {transform_indices = @transform_5, window_bounds = array<i64: 1, 16, 1>}]} {
    %c0 = arith.constant 0 : index
    %c0_0 = arith.constant 0 : index
    %0 = vector.load %arg1[%c0, %c0_0] : memref<16x128xf32, #tpu.memory_space<vmem>>, vector<16x128xf32>
    %c0_1 = arith.constant 0 : index
    %c0_2 = arith.constant 0 : index
    %1 = vector.load %arg2[%c0_1, %c0_2] : memref<16x128xf32, #tpu.memory_space<vmem>>, vector<16x128xf32>
    %cst = arith.constant dense<0.000000e+00> : vector<16x16xf32>
    %2 = tpu.matmul %1, %0, %cst {dimension_numbers = #tpu.dot_dimension_numbers<[1], [1], [0], [0], [0, 0, 1, 0], [], []>} : vector<16x128xf32>, vector<16x128xf32>, vector<16x16xf32> -> vector<16x16xf32>
    %cst_3 = arith.constant dense<0xFF800000> : vector<16xf32>
    %3 = vector.multi_reduction <maximumf>, %2, %cst_3 [0] : vector<16x16xf32> to vector<16xf32>
    %4 = vector.shape_cast %3 : vector<16xf32> to vector<1x16xf32>
    %5 = vector.broadcast %4 : vector<1x16xf32> to vector<16x16xf32>
    %6 = arith.subf %2, %5 : vector<16x16xf32>
    %7 = math.exp %6 : vector<16x16xf32>
    %cst_4 = arith.constant dense<0.000000e+00> : vector<16xf32>
    %8 = vector.multi_reduction <add>, %7, %cst_4 [0] : vector<16x16xf32> to vector<16xf32>
    %9 = vector.shape_cast %8 : vector<16xf32> to vector<1x16xf32>
    %10 = tpu.reciprocal %9 {approx = true} : vector<1x16xf32> -> vector<1x16xf32>
    %11 = tpu.iota {dimensions = array<i32: 0>} : vector<16x16xi32>
    %12 = vector.broadcast %4 : vector<1x16xf32> to vector<16x16xf32>
    %13 = arith.cmpf oeq, %2, %12 : vector<16x16xf32>
    %c16_i32 = arith.constant 16 : i32
    %14 = vector.broadcast %c16_i32 : i32 to vector<16x16xi32>
    %15 = arith.select %13, %11, %14 : vector<16x16xi1>, vector<16x16xi32>
    %cst_5 = arith.constant dense<2147483647> : vector<16xi32>
    %16 = vector.multi_reduction <minsi>, %15, %cst_5 [0] : vector<16x16xi32> to vector<16xi32>
    %17 = vector.shape_cast %16 : vector<16xi32> to vector<1x16xi32>
    %c0_6 = arith.constant 0 : index
    %c0_7 = arith.constant 0 : index
    %18 = vector.load %arg3[%c0_6, %c0_7] : memref<2x16xi32, #tpu.memory_space<vmem>>, vector<1x16xi32>
    tpu.vector_store %arg3[%c0_6, %c0_7], %17 {strides = array<i32>} : memref<2x16xi32, #tpu.memory_space<vmem>>, vector<1x16xi32>,
    %c0_8 = arith.constant 0 : index
    %c0_9 = arith.constant 0 : index
    %19 = vector.load %arg4[%c0_8, %c0_9] : memref<2x16xf32, #tpu.memory_space<vmem>>, vector<1x16xf32>
    tpu.vector_store %arg4[%c0_8, %c0_9], %10 {strides = array<i32>} : memref<2x16xf32, #tpu.memory_space<vmem>>, vector<1x16xf32>,
    %20 = vector.broadcast %17 : vector<1x16xi32> to vector<16x16xi32>
    %21 = arith.cmpi eq, %11, %20 : vector<16x16xi32>
    %cst_10 = arith.constant 0xFF800000 : f32
    %22 = vector.broadcast %cst_10 : f32 to vector<16x16xf32>
    %23 = arith.select %21, %22, %2 : vector<16x16xi1>, vector<16x16xf32>
    %cst_11 = arith.constant dense<0xFF800000> : vector<16xf32>
    %24 = vector.multi_reduction <maximumf>, %23, %cst_11 [0] : vector<16x16xf32> to vector<16xf32>
    %25 = vector.shape_cast %24 : vector<16xf32> to vector<1x16xf32>
    %26 = vector.broadcast %25 : vector<1x16xf32> to vector<16x16xf32>
    %27 = arith.cmpf oeq, %23, %26 : vector<16x16xf32>
    %c16_i32_12 = arith.constant 16 : i32
    %28 = vector.broadcast %c16_i32_12 : i32 to vector<16x16xi32>
    %29 = arith.select %27, %11, %28 : vector<16x16xi1>, vector<16x16xi32>
    %cst_13 = arith.constant dense<2147483647> : vector<16xi32>
    %30 = vector.multi_reduction <minsi>, %29, %cst_13 [0] : vector<16x16xi32> to vector<16xi32>
    %31 = vector.shape_cast %30 : vector<16xi32> to vector<1x16xi32>
    %32 = arith.subf %25, %4 : vector<1x16xf32>
    %33 = math.exp %32 : vector<1x16xf32>
    %34 = arith.mulf %33, %10 : vector<1x16xf32>
    %c1 = arith.constant 1 : index
    %c0_14 = arith.constant 0 : index
    %35 = vector.load %arg3[%c1, %c0_14] : memref<2x16xi32, #tpu.memory_space<vmem>>, vector<1x16xi32>
    tpu.vector_store %arg3[%c1, %c0_14], %31 {strides = array<i32>} : memref<2x16xi32, #tpu.memory_space<vmem>>, vector<1x16xi32>,
    %c1_15 = arith.constant 1 : index
    %c0_16 = arith.constant 0 : index
    %36 = vector.load %arg4[%c1_15, %c0_16] : memref<2x16xf32, #tpu.memory_space<vmem>>, vector<1x16xf32>
    tpu.vector_store %arg4[%c1_15, %c0_16], %34 {strides = array<i32>} : memref<2x16xf32, #tpu.memory_space<vmem>>, vector<1x16xf32>,
    %37 = tpu.iota {dimensions = array<i32: 1>} : vector<1x16xi32>
    %c16_i32_17 = arith.constant 16 : i32
    %38 = arith.muli %arg0, %c16_i32_17 : i32
    %39 = vector.broadcast %38 : i32 to vector<1x16xi32>
    %40 = arith.addi %39, %37 : vector<1x16xi32>
    %c16_i32_18 = arith.constant 16 : i32
    %41 = vector.broadcast %c16_i32_18 : i32 to vector<1x16xi32>
    %42 = arith.cmpi slt, %40, %41 : vector<1x16xi32>
    %43 = vector.broadcast %10 : vector<1x16xf32> to vector<16x16xf32>
    %44 = arith.mulf %7, %43 : vector<16x16xf32>
    %cst_19 = arith.constant 0.000000e+00 : f32
    %45 = vector.shape_cast %42 : vector<1x16xi1> to vector<1x16xi1>
    %46 = vector.broadcast %45 : vector<1x16xi1> to vector<16x16xi1>
    %47 = vector.broadcast %cst_19 : f32 to vector<16x16xf32>
    %48 = arith.select %46, %44, %47 : vector<16x16xi1>, vector<16x16xf32>
    %cst_20 = arith.constant dense<0.000000e+00> : vector<16xf32>
    %49 = vector.multi_reduction <add>, %48, %cst_20 [1] : vector<16x16xf32> to vector<16xf32>
    %50 = vector.shape_cast %49 : vector<16xf32> to vector<16x1xf32>
    %c0_21 = arith.constant 0 : index
    %c0_22 = arith.constant 0 : index
    %c0_23 = arith.constant 0 : index
    %51 = vector.load %arg5[%c0_21, %c0_22, %c0_23] : memref<1x16x1xf32, #tpu.memory_space<vmem>>, vector<1x16x1xf32>
    %52 = vector.shape_cast %51 : vector<1x16x1xf32> to vector<16x1xf32>
    %53 = vector.shape_cast %50 : vector<16x1xf32> to vector<1x16x1xf32>
    tpu.vector_store %arg5[%c0_21, %c0_22, %c0_23], %53 {strides = array<i32>} : memref<1x16x1xf32, #tpu.memory_space<vmem>>, vector<1x16x1xf32>,
    %cst_24 = arith.constant 0.000000e+00 : f32
    %54 = vector.broadcast %cst_24 : f32 to vector<16x16xf32>
    %55 = vector.broadcast %17 : vector<1x16xi32> to vector<16x16xi32>
    %56 = arith.cmpi eq, %11, %55 : vector<16x16xi32>
    %57 = vector.broadcast %42 : vector<1x16xi1> to vector<16x16xi1>
    %58 = arith.andi %56, %57 : vector<16x16xi1>
    %cst_25 = arith.constant 1.000000e+00 : f32
    %cst_26 = arith.constant 0.000000e+00 : f32
    %59 = vector.broadcast %cst_25 : f32 to vector<16x16xf32>
    %60 = vector.broadcast %cst_26 : f32 to vector<16x16xf32>
    %61 = arith.select %58, %59, %60 : vector<16x16xi1>, vector<16x16xf32>
    %62 = arith.addf %54, %61 : vector<16x16xf32>
    %63 = vector.broadcast %31 : vector<1x16xi32> to vector<16x16xi32>
    %64 = arith.cmpi eq, %11, %63 : vector<16x16xi32>
    %65 = vector.broadcast %42 : vector<1x16xi1> to vector<16x16xi1>
    %66 = arith.andi %64, %65 : vector<16x16xi1>
    %cst_27 = arith.constant 1.000000e+00 : f32
    %cst_28 = arith.constant 0.000000e+00 : f32
    %67 = vector.broadcast %cst_27 : f32 to vector<16x16xf32>
    %68 = vector.broadcast %cst_28 : f32 to vector<16x16xf32>
    %69 = arith.select %66, %67, %68 : vector<16x16xi1>, vector<16x16xf32>
    %70 = arith.addf %62, %69 : vector<16x16xf32>
    %cst_29 = arith.constant dense<0.000000e+00> : vector<16xf32>
    %71 = vector.multi_reduction <add>, %70, %cst_29 [1] : vector<16x16xf32> to vector<16xf32>
    %72 = vector.shape_cast %71 : vector<16xf32> to vector<16x1xf32>
    %c0_30 = arith.constant 0 : index
    %c0_31 = arith.constant 0 : index
    %c0_32 = arith.constant 0 : index
    %73 = vector.load %arg6[%c0_30, %c0_31, %c0_32] : memref<1x16x1xf32, #tpu.memory_space<vmem>>, vector<1x16x1xf32>
    %74 = vector.shape_cast %73 : vector<1x16x1xf32> to vector<16x1xf32>
    %75 = vector.shape_cast %72 : vector<16x1xf32> to vector<1x16x1xf32>
    tpu.vector_store %arg6[%c0_30, %c0_31, %c0_32], %75 {strides = array<i32>} : memref<1x16x1xf32, #tpu.memory_space<vmem>>, vector<1x16x1xf32>,
    return
  }
  func.func @transform_0(%arg0: i32) -> (i32, i32) {
    %c0_i32 = arith.constant 0 : i32
    %c0_i32_0 = arith.constant 0 : i32
    return %arg0, %c0_i32 : i32, i32
  }
  func.func @transform_1(%arg0: i32) -> (i32, i32) {
    %c0_i32 = arith.constant 0 : i32
    %c0_i32_0 = arith.constant 0 : i32
    %c0_i32_1 = arith.constant 0 : i32
    return %c0_i32, %c0_i32_0 : i32, i32
  }
  func.func @transform_2(%arg0: i32) -> (i32, i32) {
    %c0_i32 = arith.constant 0 : i32
    %c0_i32_0 = arith.constant 0 : i32
    return %c0_i32, %arg0 : i32, i32
  }
  func.func @transform_3(%arg0: i32) -> (i32, i32) {
    %c0_i32 = arith.constant 0 : i32
    %c0_i32_0 = arith.constant 0 : i32
    return %c0_i32, %arg0 : i32, i32
  }
  func.func @transform_4(%arg0: i32) -> (i32, i32, i32) {
    %c0_i32 = arith.constant 0 : i32
    %c0_i32_0 = arith.constant 0 : i32
    %c0_i32_1 = arith.constant 0 : i32
    return %arg0, %c0_i32, %c0_i32_0 : i32, i32, i32
  }
  func.func @transform_5(%arg0: i32) -> (i32, i32, i32) {
    %c0_i32 = arith.constant 0 : i32
    %c0_i32_0 = arith.constant 0 : i32
    %c0_i32_1 = arith.constant 0 : i32
    return %arg0, %c0_i32, %c0_i32_0 : i32, i32, i32
  }
}

</mosaic_0001>

<llo_original>
// kernel: tc_moe_gate.1
$region0: #{tc_moe_gate.1}
  #allocation0 [shape = 'u32[]', space=smem, size = 0x4, offset = 0x4, fixed_abs, tag = 'smem constant byte address 0x4 - core index']
  #allocation1 [shape = 'u32[144,128]{1,0:T(1,128)}', space=vmem, size = 0x12000, scoped, tag = 'internal scratch']
  %s0 = inlined_call_operand.hbm [shape: f32[16,128], index: 0, kind: input, shape index: {}]
  %s1 = inlined_call_operand.hbm [shape: f32[16,128], index: 1, kind: input, shape index: {}]
  %s2 = inlined_call_operand.hbm [shape: s32[2,16], index: 2, kind: output, shape index: {0}]
  %s3 = inlined_call_operand.hbm [shape: f32[2,16], index: 3, kind: output, shape index: {1}]
  %s4 = inlined_call_operand.vmem [shape: f32[1,16,1], index: 4, kind: output, shape index: {2}]
  %s5 = inlined_call_operand.vmem [shape: f32[1,16,1], index: 5, kind: output, shape index: {3}]
  %6 = xla_tuple %s2, %s3, %s4, %s5
  %s7 = sld [smem:[#allocation0]]
  $region50: #{tc_moe_gate.1} parent=0
    _
  %s9 = ssub.s32 1, %s7
  %s10 = scalar_select 0, %s9, %s7
  $region1: #{tc_moe_gate.1} parent=0
    #allocation2 [shape = 'u8[8192]{0}', space=vmem, size = 0x2000, scoped, tag = 'input window, operand 0, single buffered']
    #allocation3 [shape = 's32[1]{0}', space=sflag, size = 0x4, scoped, tag = 'scoped memory for tc_moe_gate.1']
    #allocation4 [shape = 's32[1]{0}', space=sflag, size = 0x4, scoped, tag = 'scoped memory for tc_moe_gate.1']
    #allocation5 [shape = 'u8[8192]{0}', space=vmem, size = 0x2000, scoped, tag = 'input window, operand 1, single buffered']
    #allocation6 [shape = 's32[1]{0}', space=sflag, size = 0x4, scoped, tag = 'scoped memory for tc_moe_gate.1']
    #allocation7 [shape = 'u8[1024]{0}', space=vmem, size = 0x400, scoped, tag = 'output window, operand 0, single buffered']
    #allocation8 [shape = 'u8[1024]{0}', space=vmem, size = 0x400, scoped, tag = 'output window, operand 1, single buffered']
    #allocation9 [shape = 's32[1]{0}', space=sflag, size = 0x4, scoped, tag = 'scoped memory for tc_moe_gate.1']
    %11 = vsyncpa [#allocation3], 0
    %12 = vsyncpa [#allocation6], 0
    %13 = vsyncpa [#allocation4], 0
    %14 = vsyncpa [#allocation9], 0
    // Predicated region
    $region2: #{tc_moe_gate.1} parent=1 // pred_check
      _
    $region3: #{tc_moe_gate.1} parent=1 // pred_check_branch
      %16 = sbr.rel (0) target = $region5
    $region4: #{tc_moe_gate.1} parent=1 // pred_region
      %s18 = ssub.s32 256, 256
      %19 = vsyncadd [#allocation3], %s18
      %s20 = sshll.u32 [#allocation2], 4
      %s21 = int_to_ptr.vmem [resolvable:$true] %s20
      %26 = dma.hbm_to_vmem [thread:$0]  %s0, 256, %s21, [#allocation3], 128, 128, 8
    $region5: #{tc_moe_gate.1} parent=1 // pred_fallthru
      _
    // Predicated region
    $region6: #{tc_moe_gate.1} parent=1 // pred_check
      _
    $region7: #{tc_moe_gate.1} parent=1 // pred_check_branch
      %28 = sbr.rel (0) target = $region9
    $region8: #{tc_moe_gate.1} parent=1 // pred_region
      %s30 = ssub.s32 256, 256
      %31 = vsyncadd [#allocation6], %s30
      %s32 = sshll.u32 [#allocation5], 4
      %s33 = int_to_ptr.vmem [resolvable:$true] %s32
      %38 = dma.hbm_to_vmem [thread:$0]  %s1, 256, %s33, [#allocation6], 128, 128, 8
    $region9: #{tc_moe_gate.1} parent=1 // pred_fallthru
      _
    // Predicated region
    $region10: #{tc_moe_gate.1} parent=1 // pred_check
      _
    $region11: #{tc_moe_gate.1} parent=1 // pred_check_branch
      %40 = sbr.rel (0) target = $region13
    $region12: #{tc_moe_gate.1} parent=1 // pred_region
      %41 = dma.done [#allocation3], 256
    $region13: #{tc_moe_gate.1} parent=1 // pred_fallthru
      _
    // Predicated region
    $region14: #{tc_moe_gate.1} parent=1 // pred_check
      _
    $region15: #{tc_moe_gate.1} parent=1 // pred_check_branch
      %43 = sbr.rel (0) target = $region17
    $region16: #{tc_moe_gate.1} parent=1 // pred_region
      %44 = dma.done [#allocation6], 256
    $region17: #{tc_moe_gate.1} parent=1 // pred_fallthru
      _
    %v45 = vld [vmem:[#allocation2] sm:$0xff]
    %v46 = vld [vmem:[#allocation2 + $0x8] sm:$0xff]
    %v47 = vld [vmem:[#allocation5] sm:$0xff]
    %v48 = vld [vmem:[#allocation5 + $0x8] sm:$0xff]
    %49 = vmatprep.subr.mxu0 0.0
    %50 = vmatpush1.xpose.msra.mxu0 %v45
    %51 = vmatprep.subr.mxu0 0.0
    %52 = vmatpush1.xpose.msra.mxu0 %v46
    %53 = vmatprep.subr.mxu0 0.0
    %54 = vmatpush1.xpose.msra.mxu0 0.0
    %55 = vmatprep.subr.mxu0 0.0
    %56 = vmatpush1.xpose.msra.mxu0 0.0
    %57 = vmatprep.subr.mxu0 0.0
    %58 = vmatpush1.xpose.msra.mxu0 0.0
    %59 = vmatprep.subr.mxu0 0.0
    %60 = vmatpush1.xpose.msra.mxu0 0.0
    %61 = vmatprep.subr.mxu0 0.0
    %62 = vmatpush1.xpose.msra.mxu0 0.0
    %63 = vmatprep.subr.mxu0 0.0
    %64 = vmatpush1.xpose.msra.mxu0 0.0
    %65 = vmatprep.subr.mxu0 0.0
    %66 = vmatpush1.xpose.msra.mxu0 0.0
    %67 = vmatprep.subr.mxu0 0.0
    %68 = vmatpush1.xpose.msra.mxu0 0.0
    %69 = vmatprep.subr.mxu0 0.0
    %70 = vmatpush1.xpose.msra.mxu0 0.0
    %71 = vmatprep.subr.mxu0 0.0
    %72 = vmatpush1.xpose.msra.mxu0 0.0
    %73 = vmatprep.subr.mxu0 0.0
    %74 = vmatpush1.xpose.msra.mxu0 0.0
    %75 = vmatprep.subr.mxu0 0.0
    %76 = vmatpush1.xpose.msra.mxu0 0.0
    %77 = vmatprep.subr.mxu0 0.0
    %78 = vmatpush1.xpose.msra.mxu0 0.0
    %79 = vmatprep.subr.mxu0 0.0
    %80 = vmatpush1.xpose.msra.mxu0 0.0
    %81 = vmatprep.subr.mxu0 0.0
    %82 = vmatpush1.xpose.msra.mxu0 0.0
    %83 = vmatprep.subr.mxu0 0.0
    %84 = vmatpush1.xpose.msra.mxu0 0.0
    %85 = vmatprep.subr.mxu0 0.0
    %86 = vmatpush1.xpose.msra.mxu0 0.0
    %87 = vmatprep.subr.mxu0 0.0
    %88 = vmatpush1.xpose.msra.mxu0 0.0
    %89 = vmatprep.subr.mxu0 0.0
    %90 = vmatpush1.xpose.msra.mxu0 0.0
    %91 = vmatprep.subr.mxu0 0.0
    %92 = vmatpush1.xpose.msra.mxu0 0.0
    %93 = vmatprep.subr.mxu0 0.0
    %94 = vmatpush1.xpose.msra.mxu0 0.0
    %95 = vmatprep.subr.mxu0 0.0
    %96 = vmatpush1.xpose.msra.mxu0 0.0
    %97 = vmatprep.subr.mxu0 0.0
    %98 = vmatpush1.xpose.msra.mxu0 0.0
    %99 = vmatprep.subr.mxu0 0.0
    %100 = vmatpush1.xpose.msra.mxu0 0.0
    %101 = vmatprep.subr.mxu0 0.0
    %102 = vmatpush1.xpose.msra.mxu0 0.0
    %103 = vmatprep.subr.mxu0 0.0
    %104 = vmatpush1.xpose.msra.mxu0 0.0
    %105 = vmatprep.subr.mxu0 0.0
    %106 = vmatpush1.xpose.msra.mxu0 0.0
    %107 = vmatprep.subr.mxu0 0.0
    %108 = vmatpush1.xpose.msra.mxu0 0.0
    %109 = vmatprep.subr.mxu0 0.0
    %110 = vmatpush1.xpose.msra.mxu0 0.0
    %111 = vmatprep.subr.mxu0 0.0
    %112 = vmatpush1.xpose.msra.mxu0 0.0
    %113 = vmatprep.mubr.f32.mxu0 0.0
    %114 = vmatmul.mubr.f32.gmra.mrb[0].mxu0 %v47
    %v115 = vpop.f32.mrb[0].mxu0
    %v116 = vadd.f32 0.0, %v115
    %v117 = vpop.f32.mrb[0].mxu0
    %118 = vmatprep.mubr.f32.mxu0 0.0
    %119 = vmatmul.mubr.f32.gmra.mrb[0].mxu0 %v48
    %v120 = vpop.f32.mrb[0].mxu0
    %v121 = vadd.f32 0.0, %v120
    %v122 = vpop.f32.mrb[0].mxu0
    %123 = vdwg.mxu0
    %vm124 = vcmask 130048
    %v125 = vsel %vm124, %v116, -inf
    %v126 = vsel %vm124, %v121, -inf
    %v127 = vmax.f32 %v125, %v126
    %v128 = vrot.slane %v127, 4
    %v129 = vmax.f32 %v127, %v128
    %v130 = vrot.slane %v129, 2
    %v131 = vmax.f32 %v129, %v130
    %v132 = vrot.slane %v131, 1
    %v133 = vmax.f32 %v131, %v132
    %v134 = vsub.f32 %v116, %v133
    %v135 = vsub.f32 %v121, %v133
    %v136 = vmul.f32 %v134, 1.442695
    %v137 = vpow.pop %v136
    %v138 = vmul.f32 %v135, 1.442695
    %v139 = vpow.pop %v138
    %v140 = vsel %vm124, %v137, 0.0
    %v141 = vsel %vm124, %v139, 0.0
    %v142 = vadd.f32 %v140, %v141
    %v143 = vrot.slane %v142, 4
    %v144 = vadd.f32 %v142, %v143
    %v145 = vrot.slane %v144, 2
    %v146 = vadd.f32 %v144, %v145
    %v147 = vrot.slane %v146, 1
    %v148 = vadd.f32 %v146, %v147
    %v149 = vrcp.pop %v148
    %v150 = vlaneseq
    %v151 = vshrl.u32 %v150, 7
    %v152 = vadd.s32 %v151, 8
    %vm153 = vcmp.eq.f32.partialorder %v116, %v133
    %vm154 = vcmp.eq.f32.partialorder %v121, %v133
    %v155 = vsel %vm153, %v151, 16
    %v156 = vsel %vm154, %v152, 16
    %v157 = vsel %vm124, %v155, 2147483647
    %v158 = vsel %vm124, %v156, 2147483647
    %vm159 = vcmp.lt.s32.totalorder %v157, %v158
    %v160 = vsel %vm159, %v157, %v158
    %v161 = vrot.slane %v160, 4
    %vm162 = vcmp.lt.s32.totalorder %v160, %v161
    %v163 = vsel %vm162, %v160, %v161
    %v164 = vrot.slane %v163, 2
    %vm165 = vcmp.lt.s32.totalorder %v163, %v164
    %v166 = vsel %vm165, %v163, %v164
    %v167 = vrot.slane %v166, 1
    %vm168 = vcmp.lt.s32.totalorder %v166, %v167
    %v169 = vsel %vm168, %v166, %v167
    %vm170 = vcmask 122880
    %171 = vst.msk [vmem:[#allocation7] sm:$0x1] %vm170, %v169
    %172 = vst.msk [vmem:[#allocation8] sm:$0x1] %vm170, %v149
    %vm173 = vcmp.eq.s32.totalorder %v151, %v169
    %vm174 = vcmp.eq.s32.totalorder %v152, %v169
    %v175 = vsel %vm173, -inf, %v116
    %v176 = vsel %vm174, -inf, %v121
    %v177 = vsel %vm124, %v175, -inf
    %v178 = vsel %vm124, %v176, -inf
    %v179 = vmax.f32 %v177, %v178
    %v180 = vrot.slane %v179, 4
    %v181 = vmax.f32 %v179, %v180
    %v182 = vrot.slane %v181, 2
    %v183 = vmax.f32 %v181, %v182
    %v184 = vrot.slane %v183, 1
    %v185 = vmax.f32 %v183, %v184
    %vm186 = vcmp.eq.f32.partialorder %v175, %v185
    %vm187 = vcmp.eq.f32.partialorder %v176, %v185
    %v188 = vsel %vm186, %v151, 16
    %v189 = vsel %vm187, %v152, 16
    %v190 = vsel %vm124, %v188, 2147483647
    %v191 = vsel %vm124, %v189, 2147483647
    %vm192 = vcmp.lt.s32.totalorder %v190, %v191
    %v193 = vsel %vm192, %v190, %v191
    %v194 = vrot.slane %v193, 4
    %vm195 = vcmp.lt.s32.totalorder %v193, %v194
    %v196 = vsel %vm195, %v193, %v194
    %v197 = vrot.slane %v196, 2
    %vm198 = vcmp.lt.s32.totalorder %v196, %v197
    %v199 = vsel %vm198, %v196, %v197
    %v200 = vrot.slane %v199, 1
    %vm201 = vcmp.lt.s32.totalorder %v199, %v200
    %v202 = vsel %vm201, %v199, %v200
    %v203 = vsub.f32 %v185, %v133
    %v204 = vmul.f32 %v203, 1.442695
    %v205 = vpow.pop %v204
    %v206 = vmul.f32 %v205, %v149
    %207 = vst.msk [vmem:[#allocation7 + $0x1] sm:$0x1] %vm170, %v202
    %208 = vst.msk [vmem:[#allocation8 + $0x1] sm:$0x1] %vm170, %v206
    %v209 = vlaneseq
    %v210 = vand.u32 %v209, 127
    %s211 = smul.u32 0, 16
    %v212 = vstv %s211
    %v213 = vadd.s32 %v212, %v210
    %vm214 = vcmp.lt.s32.totalorder %v213, 16
    %v215 = vmul.f32 %v137, %v149
    %v216 = vmul.f32 %v139, %v149
    %v217 = vsel %vm214, 1, 0
    %vm218 = vcmp.eq.s32.totalorder %v217, 1
    %v219 = vsel %vm218, %v215, 0.0
    %v220 = vsel %vm218, %v216, 0.0
    %v221 = vsel %vm124, %v219, 0.0
    %222 = vadd.xlane.f32.xlu0 %v221
    %v223 = vpop.xlane.xlu0 %222
    %v224 = vsel %vm124, %v220, 0.0
    %225 = vadd.xlane.f32.xlu0 %v224
    %v226 = vpop.xlane.xlu0 %225
    %vm227 = vcmask 7168
    %228 = vst.msk [vmem:[%s4] sm:$0xff] %vm227, %v223
    %229 = vst.msk [vmem:[%s4 + $0x8] sm:$0xff] %vm227, %v226
    %vm230 = vmand %vm173, %vm218
    %vm231 = vmand %vm174, %vm218
    %v232 = vsel %vm230, 1.0, 0.0
    %v233 = vsel %vm231, 1.0, 0.0
    %v234 = vadd.f32 %v232, 0.0
    %v235 = vadd.f32 %v233, 0.0
    %vm236 = vcmp.eq.s32.totalorder %v151, %v202
    %vm237 = vcmp.eq.s32.totalorder %v152, %v202
    %vm238 = vmand %vm236, %vm218
    %vm239 = vmand %vm237, %vm218
    %v240 = vsel %vm238, 1.0, 0.0
    %v241 = vsel %vm239, 1.0, 0.0
    %v242 = vadd.f32 %v234, %v240
    %v243 = vadd.f32 %v235, %v241
    %v244 = vsel %vm124, %v242, 0.0
    %245 = vadd.xlane.f32.xlu0 %v244
    %v246 = vpop.xlane.xlu0 %245
    %v247 = vsel %vm124, %v243, 0.0
    %248 = vadd.xlane.f32.xlu0 %v247
    %v249 = vpop.xlane.xlu0 %248
    %250 = vst.msk [vmem:[%s5] sm:$0xff] %vm227, %v246
    %251 = vst.msk [vmem:[%s5 + $0x8] sm:$0xff] %vm227, %v249
    // Predicated region
    $region18: #{tc_moe_gate.1} parent=1 // pred_check
      _
    $region19: #{tc_moe_gate.1} parent=1 // pred_check_branch
      %253 = sbr.rel (0) target = $region21
    $region20: #{tc_moe_gate.1} parent=1 // pred_region
      %s255 = ssub.s32 32, 32
      %256 = vsyncadd [#allocation4], %s255
      %s258 = sshll.u32 [#allocation7], 4
      %s259 = int_to_ptr.vmem [resolvable:$true] %s258
      %261 = dma.vmem_to_hbm [thread:$0]  %s259, 32, %s2, [#allocation4]
    $region21: #{tc_moe_gate.1} parent=1 // pred_fallthru
      _
    // Predicated region
    $region22: #{tc_moe_gate.1} parent=1 // pred_check
      _
    $region23: #{tc_moe_gate.1} parent=1 // pred_check_branch
      %263 = sbr.rel (0) target = $region25
    $region24: #{tc_moe_gate.1} parent=1 // pred_region
      %s265 = ssub.s32 32, 32
      %266 = vsyncadd [#allocation9], %s265
      %s268 = sshll.u32 [#allocation8], 4
      %s269 = int_to_ptr.vmem [resolvable:$true] %s268
      %271 = dma.vmem_to_hbm [thread:$0]  %s269, 32, %s3, [#allocation9]
    $region25: #{tc_moe_gate.1} parent=1 // pred_fallthru
      _
    // Predicated region
    $region26: #{tc_moe_gate.1} parent=1 // pred_check
      _
    $region27: #{tc_moe_gate.1} parent=1 // pred_check_branch
      %273 = sbr.rel (0) target = $region29
    $region28: #{tc_moe_gate.1} parent=1 // pred_region
      _
    $region29: #{tc_moe_gate.1} parent=1 // pred_fallthru
      _
    // Predicated region
    $region30: #{tc_moe_gate.1} parent=1 // pred_check
      _
    $region31: #{tc_moe_gate.1} parent=1 // pred_check_branch
      %275 = sbr.rel (0) target = $region33
    $region32: #{tc_moe_gate.1} parent=1 // pred_region
      _
    $region33: #{tc_moe_gate.1} parent=1 // pred_fallthru
      _
    // Predicated region
    $region34: #{tc_moe_gate.1} parent=1 // pred_check
      _
    $region35: #{tc_moe_gate.1} parent=1 // pred_check_branch
      %277 = sbr.rel (0) target = $region37
    $region36: #{tc_moe_gate.1} parent=1 // pred_region
      %278 = dma.done [#allocation4], 32
    $region37: #{tc_moe_gate.1} parent=1 // pred_fallthru
      _
    // Predicated region
    $region38: #{tc_moe_gate.1} parent=1 // pred_check
      _
    $region39: #{tc_moe_gate.1} parent=1 // pred_check_branch
      %280 = sbr.rel (0) target = $region41
    $region40: #{tc_moe_gate.1} parent=1 // pred_region
      %281 = dma.done [#allocation9], 32
    $region41: #{tc_moe_gate.1} parent=1 // pred_fallthru
      _
    // Predicated region
    $region42: #{tc_moe_gate.1} parent=1 // pred_check
      _
    $region43: #{tc_moe_gate.1} parent=1 // pred_check_branch
      %283 = sbr.rel (0) target = $region45
    $region44: #{tc_moe_gate.1} parent=1 // pred_region
      _
    $region45: #{tc_moe_gate.1} parent=1 // pred_fallthru
      _
    // Predicated region
    $region46: #{tc_moe_gate.1} parent=1 // pred_check
      _
    $region47: #{tc_moe_gate.1} parent=1 // pred_check_branch
      %285 = sbr.rel (0) target = $region49
    $region48: #{tc_moe_gate.1} parent=1 // pred_region
      _
    $region49: #{tc_moe_gate.1} parent=1 // pred_fallthru
      _
    %286 = vsyncpa [#allocation3], 1
    %287 = vsyncpa [#allocation6], 1
    %288 = vsyncpa [#allocation4], 1
    %289 = vsyncpa [#allocation9], 1

</llo_original>
